<compile_context>
chip_gen: v7x
topology: tpu7x:2x2x1
jax: 0.10.0
libtpu: 0.0.40
codegen_flags: <defaults>
</compile_context>

<pallas_src>
import functools
import math

import numpy as np

import jax
import jax.numpy as jnp
from jax.experimental import pallas as pl
from jax.experimental.pallas import tpu as pltpu


# ---------------------------------------------------------------------------
# Sinc resample kernel matrix (torchaudio-compatible, NaN-safe), host-side.
# ---------------------------------------------------------------------------

def _sinc_kernel_matrix(orig_g, new_g, lowpass_filter_width=6, rolloff=0.99):
    base = min(orig_g, new_g) * rolloff
    width = int(math.ceil(lowpass_filter_width * orig_g / base))
    idx = np.arange(-width, width + orig_g, dtype=np.float64) / orig_g
    t = (-np.arange(new_g, dtype=np.float64) / new_g)[:, None] + idx[None, :]
    t = t * base
    t = np.clip(t, -lowpass_filter_width, lowpass_filter_width)
    window = np.cos(t * math.pi / lowpass_filter_width / 2.0) ** 2
    t = t * math.pi
    scale = base / orig_g
    safe_t = np.where(t == 0.0, 1.0, t)
    kernel = np.where(t == 0.0, 1.0, np.sin(safe_t) / safe_t) * window * scale
    return kernel.astype(np.float32), width                 # (new_g, W) np, int


def _choose_tm(num_frames):
    """Frames per grid tile: as large as possible while keeping >= 2 tiles."""
    for tm in (2048, 1024, 512, 256):
        if num_frames >= 2 * tm:
            return tm
    return 128


_HALO = 128   # halo columns (one lane-group) fetched from the next frame tile


# ---------------------------------------------------------------------------
# Pallas kernel: sinc resample (in-kernel framing, MXU) + fused time mask.
# ---------------------------------------------------------------------------

def _resample_mask_kernel(start_ref, end_ref, cur_ref, nxt_ref, kmat_ref, o_ref,
                          *, tm, new_g, orig_g, n_sub, apply_mask):
    # cur_ref: (1, orig_g, tm)   nxt_ref: (1, orig_g, HALO)
    # kmat_ref: (n_sub, new_g, orig_g)   o_ref: (1, new_g, tm)
    cur = cur_ref[0]                                            # (orig_g, tm)
    acc = jnp.dot(kmat_ref[0], cur, preferred_element_type=jnp.float32)
    if n_sub > 1:
        ext = jnp.concatenate([cur, nxt_ref[0]], axis=1)        # (orig_g, tm+HALO)
        for s in range(1, n_sub):
            acc = acc + jnp.dot(kmat_ref[s], ext[:, s:s + tm],
                                preferred_element_type=jnp.float32)
    if apply_mask:
        b = pl.program_id(0)
        i = pl.program_id(1)
        # global output-sample index of element (j, m_local) is
        # (i*tm + m_local) * new_g + j
        m = i * tm + jax.lax.broadcasted_iota(jnp.int32, acc.shape, 1)
        j = jax.lax.broadcasted_iota(jnp.int32, acc.shape, 0)
        pos = m * new_g + j
        keep = jnp.logical_or(pos < start_ref[b], pos >= end_ref[b])
        acc = jnp.where(keep, acc, 0.0)
    o_ref[0] = acc.astype(o_ref.dtype)


@functools.partial(jax.jit, static_argnames=("orig_g", "new_g", "apply_mask"))
def _speed_perturb_and_mask(x, mask_start, mask_end, *, orig_g, new_g, apply_mask):
    """x: (R, L) float -> (R, ceil(L*new_g/orig_g)) in x.dtype, optional block mask.

    mask_start / mask_end: (R,) int32 in output-sample coordinates; ignored when
    apply_mask is False (static flag -> masking epilogue is compiled out).
    """
    rows, length = x.shape
    kmat_np, width = _sinc_kernel_matrix(orig_g, new_g)
    w = kmat_np.shape[1]                                 # W = 2*width + orig_g
    n_sub = -(-w // orig_g)
    assert n_sub - 1 <= _HALO, "halo too small for this resampling ratio"
    w_pad = n_sub * orig_g
    kmat_np = np.pad(kmat_np, ((0, 0), (0, w_pad - w)))  # zero coeffs on pad cols
    kmat_sub = jnp.asarray(
        kmat_np.reshape(new_g, n_sub, orig_g).transpose(1, 0, 2), dtype=x.dtype)

    num_frames = length // orig_g + 1
    tm = _choose_tm(num_frames)
    n_tiles = pl.cdiv(num_frames, tm)
    m_pad = n_tiles * tm
    m_cols = m_pad + _HALO                               # extra cols for the halo
    lp = m_cols * orig_g
    xp = jnp.pad(x, ((0, 0), (width, lp - width - length)))
    # Phase-transposed view: xt[b, r, m] = xp[b, m*orig_g + r]  (no data blowup).
    xt = jnp.transpose(xp.reshape(rows, m_cols, orig_g), (0, 2, 1))

    kernel = functools.partial(_resample_mask_kernel, tm=tm, new_g=new_g,
                               orig_g=orig_g, n_sub=n_sub, apply_mask=apply_mask)
    itemsize = x.dtype.itemsize
    flops = 2 * rows * m_pad * new_g * w_pad
    bytes_accessed = int(
        (rows * orig_g * (m_cols + n_tiles * _HALO)      # xt + halo re-read
         + rows * new_g * m_pad                          # output
         + n_sub * new_g * orig_g) * itemsize)

    out_pm = pl.pallas_call(
        kernel,
        out_shape=jax.ShapeDtypeStruct((rows, new_g, m_pad), x.dtype),
        grid_spec=pltpu.PrefetchScalarGridSpec(
            num_scalar_prefetch=2,
            grid=(rows, n_tiles),
            in_specs=[
                pl.BlockSpec((1, orig_g, tm), lambda b, i, s, e: (b, 0, i)),
                pl.BlockSpec((1, orig_g, _HALO),
                             lambda b, i, s, e: (b, 0, (i + 1) * (tm // _HALO))),
                pl.BlockSpec((n_sub, new_g, orig_g),
                             lambda b, i, s, e: (0, 0, 0)),
            ],
            out_specs=pl.BlockSpec((1, new_g, tm), lambda b, i, s, e: (b, 0, i)),
        ),
        compiler_params=pltpu.CompilerParams(
            dimension_semantics=("parallel", "parallel")),
        cost_estimate=pl.CostEstimate(flops=flops, transcendentals=0,
                                      bytes_accessed=bytes_accessed),
    )(mask_start, mask_end, xt, xt, kmat_sub)

    target_length = -((-new_g * length) // orig_g)
    out = jnp.transpose(out_pm, (0, 2, 1)).reshape(rows, m_pad * new_g)
    return out[:, :target_length]


# ---------------------------------------------------------------------------
# Pallas kernel: standalone tiled time mask (budgeted 2-D tiling).
# ---------------------------------------------------------------------------

def _time_mask_kernel(x_ref, start_ref, end_ref, o_ref):
    # x_ref/o_ref: (b_blk, TILE)   start_ref/end_ref: (b_blk, 1) int32
    col = (pl.program_id(1) * x_ref.shape[1]
           + jax.lax.broadcasted_iota(jnp.int32, x_ref.shape, 1))
    keep = jnp.logical_or(col < start_ref[...], col >= end_ref[...])
    o_ref[...] = jnp.where(keep, x_ref[...], 0)


@jax.jit
def _time_mask(x, start, end):
    """x: (B, T); start/end: (B, 1) int32; zero-out [start, end) per row."""
    b, t = x.shape
    tile = min(8192, pl.cdiv(t, 128) * 128)       # lane-dense, multiple of 128
    b_blk = b if b <= 64 else 64                  # keeps blocks well under VMEM budget
    grid = (pl.cdiv(b, b_blk), pl.cdiv(t, tile))
    bytes_accessed = int(2 * b * t * x.dtype.itemsize + 8 * b)
    return pl.pallas_call(
        _time_mask_kernel,
        out_shape=jax.ShapeDtypeStruct((b, t), x.dtype),
        grid_spec=pltpu.PrefetchScalarGridSpec(
            num_scalar_prefetch=0,
            grid=grid,
            in_specs=[
                pl.BlockSpec((b_blk, tile), lambda ib, it: (ib, it)),
                pl.BlockSpec((b_blk, 1), lambda ib, it: (ib, 0)),
                pl.BlockSpec((b_blk, 1), lambda ib, it: (ib, 0)),
            ],
            out_specs=pl.BlockSpec((b_blk, tile), lambda ib, it: (ib, it)),
        ),
        compiler_params=pltpu.CompilerParams(
            dimension_semantics=("parallel", "parallel")),
        cost_estimate=pl.CostEstimate(flops=int(b * t), transcendentals=0,
                                      bytes_accessed=bytes_accessed),
    )(x, start, end)


# ---------------------------------------------------------------------------
# Pure-XLA reference for the resample (used only for the self-check in __main__).
# ---------------------------------------------------------------------------

def _resample_ref(x, orig_g, new_g):
    kmat_np, width = _sinc_kernel_matrix(orig_g, new_g)
    kmat = jnp.asarray(kmat_np)
    b, length = x.shape
    w = kmat.shape[1]
    num_frames = length // orig_g + 1
    xp = jnp.pad(x, ((0, 0), (width, num_frames * orig_g + width - length)))
    idx = (jnp.arange(num_frames) * orig_g)[:, None] + jnp.arange(w)[None, :]
    frames = xp[:, idx]                                           # (B, M, W)
    out = jnp.einsum("bmw,jw->bmj", frames, kmat,
                     precision=jax.lax.Precision.HIGHEST)
    out = out.reshape(b, num_frames * new_g)
    return out[:, : -((-new_g * length) // orig_g)]


# ---------------------------------------------------------------------------
# Module
# ---------------------------------------------------------------------------

def _flatten_to_2d(w):
    lead = w.shape[:-1]
    rows = math.prod(lead) if lead else 1
    return w.reshape((rows, w.shape[-1])), lead


class WaveformDataAugmentation:
    def __init__(self, sample_rate, p_data_augmentation=0, p_speed_perturbation=0.3,
                 p_pitch_shift=0.3, p_time_masking=0.3,
                 speed_perturbation_factors=(0.7, 0.8, 0.85, 0.9, 0.95,
                                             1.05, 1.1, 1.15, 1.2, 1.3),
                 pitch_shift_steps=(-4, -3, -2, -1, 1, 2, 3, 4, 5, 6),
                 time_masking_percentage=(1, 2, 3, 4, 5, 6, 7, 8)):
        assert 0 <= p_data_augmentation <= 1, "p_data_augmentation must be in [0, 1]"
        assert 0 <= p_speed_perturbation <= 1, "p_speed_perturbation must be in [0, 1]"
        assert 0 <= p_pitch_shift <= 1, "p_pitch_shift must be in [0, 1]"
        assert 0 <= p_time_masking <= 1, "p_time_masking must be in [0, 1]"
        self.sample_rate = sample_rate
        self.apply_data_augmentation = p_data_augmentation
        self.p_speed_perturbation = p_speed_perturbation
        self.p_pitch_shift = p_pitch_shift
        self.p_time_masking = p_time_masking
        self.speed_perturbation_factors = speed_perturbation_factors
        self.pitch_shift_steps = pitch_shift_steps
        self.time_masking_percentage = time_masking_percentage

    def __call__(self, key, waveform_1, waveform_2=None):
        # All random decisions in ONE device call -> a single host sync.
        u = [float(v) for v in jax.device_get(
            jax.random.uniform(key, (9,), dtype=jnp.float32))]

        if not (u[0] < self.apply_data_augmentation):
            return waveform_1, waveform_2

        do_speed = u[1] < self.p_speed_perturbation
        do_pitch = u[3] < self.p_pitch_shift
        do_mask = u[5] < self.p_time_masking

        # TODO(synk): torchaudio PitchShift = phase-vocoder time-stretch on a complex
        # STFT + resample; there is no clean Pallas equivalent here, so the pitch
        # branch is a pass-through even when selected.
        del do_pitch

        orig_g = new_g = 1
        if do_speed:
            n = len(self.speed_perturbation_factors)
            factor = self.speed_perturbation_factors[min(int(u[2] * n), n - 1)]
            source_sr = int(factor * self.sample_rate)
            target_sr = int(self.sample_rate)
            g = math.gcd(source_sr, target_sr)
            orig_g, new_g = source_sr // g, target_sr // g
            do_speed = orig_g != new_g

        if not (do_speed or do_mask):
            return waveform_1, waveform_2

        pct = None
        if do_mask:
            n = len(self.time_masking_percentage)
            pct = self.time_masking_percentage[min(int(u[6] * n), n - 1)]

        def _augment(w, u_start):
            x, lead = _flatten_to_2d(w)
            rows, t_in = x.shape
            in_dtype = x.dtype
            xf = x if x.dtype in (jnp.float32, jnp.bfloat16) else x.astype(jnp.float32)

            t_out = -((-new_g * t_in) // orig_g) if do_speed else t_in
            if do_mask:
                mask_len = max(int(t_out * pct / 100), 1)
                hi = max(t_out - mask_len + 1, 1)
                s0 = min(int(u_start * hi), hi - 1)
                start = jnp.full((rows,), s0, dtype=jnp.int32)
                end = start + jnp.int32(mask_len)
            else:
                start = jnp.zeros((rows,), dtype=jnp.int32)
                end = jnp.zeros((rows,), dtype=jnp.int32)

            if do_speed:
                y = _speed_perturb_and_mask(xf, start, end, orig_g=orig_g,
                                            new_g=new_g, apply_mask=bool(do_mask))
            else:
                y = _time_mask(xf, start[:, None], end[:, None])

            if y.dtype != in_dtype:
                y = y.astype(in_dtype)
            return y.reshape(lead + (y.shape[-1],))

        y1 = _augment(waveform_1, u[7])
        y2 = _augment(waveform_2, u[8]) if waveform_2 is not None else None
        return y1, y2


# ---------------------------------------------------------------------------
# Demo / self-check
# ---------------------------------------------------------------------------

if __name__ == "__main__":
    key = jax.random.PRNGKey(0)
    k_in1, k_in2, k_aug1, k_aug2 = jax.random.split(key, 4)
    B, T = 2, 2048
    w1 = jax.random.normal(k_in1, (B, T), dtype=jnp.float32)
    w2 = jax.random.normal(k_in2, (B, T), dtype=jnp.float32)

    # 1) Pallas resample + fused mask vs pure-XLA reference (factor 0.7 -> 7/10).
    orig_g, new_g = 7, 10
    starts = jnp.asarray([100, 300], dtype=jnp.int32)
    ends = starts + 500
    got = _speed_perturb_and_mask(w1, starts, ends, orig_g=orig_g, new_g=new_g,
                                  apply_mask=True)
    ref = _resample_ref(w1, orig_g, new_g)
    col = jnp.arange(ref.shape[1], dtype=jnp.int32)[None, :]
    keep = jnp.logical_or(col < starts[:, None], col >= ends[:, None])
    ref = jnp.where(keep, ref, 0.0)
    got = jax.block_until_ready(got)
    assert got.shape == ref.shape, (got.shape, ref.shape)
    assert float(jnp.max(jnp.abs(got - ref))) < 7.5e-2   # MXU default precision

    # 1b) Different ratio (factor 0.8 -> 4/5, larger n_sub), no mask.
    zeros = jnp.zeros((B,), dtype=jnp.int32)
    got2 = _speed_perturb_and_mask(w1, zeros, zeros, orig_g=4, new_g=5,
                                   apply_mask=False)
    ref2 = _resample_ref(w1, 4, 5)
    got2 = jax.block_until_ready(got2)
    assert got2.shape == ref2.shape, (got2.shape, ref2.shape)
    assert float(jnp.max(jnp.abs(got2 - ref2))) < 7.5e-2

    # 2) Standalone tiled time-mask kernel vs reference (exact).
    m = jax.block_until_ready(_time_mask(w1, starts[:, None], ends[:, None]))
    colT = jnp.arange(T, dtype=jnp.int32)[None, :]
    mref = jnp.where(jnp.logical_or(colT < starts[:, None], colT >= ends[:, None]),
                     w1, 0.0)
    assert float(jnp.max(jnp.abs(m - mref))) < 1e-6

    # 3) Full module with speed perturbation + time masking forced.
    aug = WaveformDataAugmentation(sample_rate=16000,
                                   p_data_augmentation=1.0,
                                   p_speed_perturbation=1.0,
                                   p_pitch_shift=0.3,
                                   p_time_masking=1.0)
    o1, o2 = aug(k_aug1, w1, w2)
    jax.block_until_ready(o1)
    jax.block_until_ready(o2)
    assert o1.shape[0] == B and o2.shape == o1.shape

    # 3b) Mask-only module exercises the standalone tiled mask kernel.
    aug2 = WaveformDataAugmentation(sample_rate=16000,
                                    p_data_augmentation=1.0,
                                    p_speed_perturbation=0.0,
                                    p_pitch_shift=0.0,
                                    p_time_masking=1.0)
    m1, m2 = aug2(k_aug2, w1, w2)
    jax.block_until_ready(m1)
    assert m1.shape == (B, T) and m2.shape == (B, T)

    # 4) Default constructor (p_data_augmentation=0) is an exact identity.
    ident = WaveformDataAugmentation(sample_rate=16000)
    p1, p2 = ident(jax.random.PRNGKey(1), w1, w2)
    assert p1 is w1 and p2 is w2

    print("KERNEL_OK")
</pallas_src>

<mosaic_0001>
module attributes {stable_mosaic.version = 11 : i64} {
  func.func @_resample_mask_kernel(%arg0: i32, %arg1: i32, %arg2: memref<2xi32, #tpu.memory_space<smem>>, %arg3: memref<2xi32, #tpu.memory_space<smem>>, %arg4: memref<1x7x128xf32, #tpu.memory_space<vmem>>, %arg5: memref<1x7x128xf32, #tpu.memory_space<vmem>>, %arg6: memref<3x10x7xf32, #tpu.memory_space<vmem>>, %arg7: memref<1x10x128xf32, #tpu.memory_space<vmem>>) attributes {dimension_semantics = [#tpu.dimension_semantics<parallel>, #tpu.dimension_semantics<parallel>], iteration_bounds = array<i64: 2, 3>, scalar_prefetch = 2 : i64, scratch_operands = 0 : i64, tpu.core_type = #tpu.core_type<tc>, window_params = [{transform_indices = @transform_0, window_bounds = array<i64: 1, 7, 128>}, {transform_indices = @transform_1, window_bounds = array<i64: 1, 7, 128>}, {pipeline_mode = #tpu.pipeline_mode<synchronous>, transform_indices = @transform_2, window_bounds = array<i64: 3, 10, 7>}, {transform_indices = @transform_3, window_bounds = array<i64: 1, 10, 128>}]} {
    %c0 = arith.constant 0 : index
    %c0_0 = arith.constant 0 : index
    %c0_1 = arith.constant 0 : index
    %0 = vector.load %arg4[%c0, %c0_0, %c0_1] : memref<1x7x128xf32, #tpu.memory_space<vmem>>, vector<1x7x128xf32>
    %1 = vector.shape_cast %0 : vector<1x7x128xf32> to vector<7x128xf32>
    %c0_2 = arith.constant 0 : index
    %c0_3 = arith.constant 0 : index
    %c0_4 = arith.constant 0 : index
    %2 = vector.load %arg6[%c0_2, %c0_3, %c0_4] : memref<3x10x7xf32, #tpu.memory_space<vmem>>, vector<1x10x7xf32>
    %3 = vector.shape_cast %2 : vector<1x10x7xf32> to vector<10x7xf32>
    %cst = arith.constant dense<0.000000e+00> : vector<10x128xf32>
    %4 = tpu.matmul %3, %1, %cst {dimension_numbers = #tpu.dot_dimension_numbers<[1], [0], [0], [1], [0, 0, 1, 1], [], []>} : vector<10x7xf32>, vector<7x128xf32>, vector<10x128xf32> -> vector<10x128xf32>
    %c0_5 = arith.constant 0 : index
    %c0_6 = arith.constant 0 : index
    %c0_7 = arith.constant 0 : index
    %5 = vector.load %arg5[%c0_5, %c0_6, %c0_7] : memref<1x7x128xf32, #tpu.memory_space<vmem>>, vector<1x7x128xf32>
    %6 = vector.shape_cast %5 : vector<1x7x128xf32> to vector<7x128xf32>
    %7 = tpu.concatenate %1, %6 in 1 : vector<7x128xf32>, vector<7x128xf32> -> vector<7x256xf32>
    %c1 = arith.constant 1 : index
    %c0_8 = arith.constant 0 : index
    %c0_9 = arith.constant 0 : index
    %8 = vector.load %arg6[%c1, %c0_8, %c0_9] : memref<3x10x7xf32, #tpu.memory_space<vmem>>, vector<1x10x7xf32>
    %9 = vector.shape_cast %8 : vector<1x10x7xf32> to vector<10x7xf32>
    %10 = vector.extract_strided_slice %7 {offsets = [0, 1], sizes = [7, 128], strides = [1, 1]} : vector<7x256xf32> to vector<7x128xf32>
    %cst_10 = arith.constant dense<0.000000e+00> : vector<10x128xf32>
    %11 = tpu.matmul %9, %10, %cst_10 {dimension_numbers = #tpu.dot_dimension_numbers<[1], [0], [0], [1], [0, 0, 1, 1], [], []>} : vector<10x7xf32>, vector<7x128xf32>, vector<10x128xf32> -> vector<10x128xf32>
    %12 = arith.addf %4, %11 : vector<10x128xf32>
    %c2 = arith.constant 2 : index
    %c0_11 = arith.constant 0 : index
    %c0_12 = arith.constant 0 : index
    %13 = vector.load %arg6[%c2, %c0_11, %c0_12] : memref<3x10x7xf32, #tpu.memory_space<vmem>>, vector<1x10x7xf32>
    %14 = vector.shape_cast %13 : vector<1x10x7xf32> to vector<10x7xf32>
    %15 = vector.extract_strided_slice %7 {offsets = [0, 2], sizes = [7, 128], strides = [1, 1]} : vector<7x256xf32> to vector<7x128xf32>
    %cst_13 = arith.constant dense<0.000000e+00> : vector<10x128xf32>
    %16 = tpu.matmul %14, %15, %cst_13 {dimension_numbers = #tpu.dot_dimension_numbers<[1], [0], [0], [1], [0, 0, 1, 1], [], []>} : vector<10x7xf32>, vector<7x128xf32>, vector<10x128xf32> -> vector<10x128xf32>
    %17 = arith.addf %12, %16 : vector<10x128xf32>
    %c128_i32 = arith.constant 128 : i32
    %18 = arith.muli %arg1, %c128_i32 : i32
    %19 = tpu.iota {dimensions = array<i32: 1>} : vector<10x128xi32>
    %20 = vector.broadcast %18 : i32 to vector<10x128xi32>
    %21 = arith.addi %20, %19 : vector<10x128xi32>
    %22 = tpu.iota {dimensions = array<i32: 0>} : vector<10x128xi32>
    %c10_i32 = arith.constant 10 : i32
    %23 = vector.broadcast %c10_i32 : i32 to vector<10x128xi32>
    %24 = arith.muli %21, %23 : vector<10x128xi32>
    %25 = arith.addi %24, %22 : vector<10x128xi32>
    %26 = arith.index_cast %arg0 : i32 to index
    %27 = memref.load %arg2[%26] : memref<2xi32, #tpu.memory_space<smem>>
    %28 = vector.broadcast %27 : i32 to vector<10x128xi32>
    %29 = arith.cmpi slt, %25, %28 : vector<10x128xi32>
    %30 = arith.index_cast %arg0 : i32 to index
    %31 = memref.load %arg3[%30] : memref<2xi32, #tpu.memory_space<smem>>
    %32 = vector.broadcast %31 : i32 to vector<10x128xi32>
    %33 = arith.cmpi sge, %25, %32 : vector<10x128xi32>
    %34 = arith.ori %29, %33 : vector<10x128xi1>
    %cst_14 = arith.constant 0.000000e+00 : f32
    %35 = vector.broadcast %cst_14 : f32 to vector<10x128xf32>
    %36 = arith.select %34, %17, %35 : vector<10x128xi1>, vector<10x128xf32>
    %c0_15 = arith.constant 0 : index
    %c0_16 = arith.constant 0 : index
    %c0_17 = arith.constant 0 : index
    %37 = vector.load %arg7[%c0_15, %c0_16, %c0_17] : memref<1x10x128xf32, #tpu.memory_space<vmem>>, vector<1x10x128xf32>
    %38 = vector.shape_cast %37 : vector<1x10x128xf32> to vector<10x128xf32>
    %39 = vector.shape_cast %36 : vector<10x128xf32> to vector<1x10x128xf32>
    tpu.vector_store %arg7[%c0_15, %c0_16, %c0_17], %39 {strides = array<i32>} : memref<1x10x128xf32, #tpu.memory_space<vmem>>, vector<1x10x128xf32>,
    return
  }
  func.func @transform_0(%arg0: i32, %arg1: i32, %arg2: memref<2xi32, #tpu.memory_space<smem>>, %arg3: memref<2xi32, #tpu.memory_space<smem>>) -> (i32, i32, i32) {
    %c0_i32 = arith.constant 0 : i32
    %c0_i32_0 = arith.constant 0 : i32
    return %arg0, %c0_i32, %arg1 : i32, i32, i32
  }
  func.func @transform_1(%arg0: i32, %arg1: i32, %arg2: memref<2xi32, #tpu.memory_space<smem>>, %arg3: memref<2xi32, #tpu.memory_space<smem>>) -> (i32, i32, i32) {
    %c1_i32 = arith.constant 1 : i32
    %0 = arith.addi %arg1, %c1_i32 : i32
    %c1_i32_0 = arith.constant 1 : i32
    %1 = arith.muli %0, %c1_i32_0 : i32
    %c0_i32 = arith.constant 0 : i32
    %c0_i32_1 = arith.constant 0 : i32
    return %arg0, %c0_i32, %1 : i32, i32, i32
  }
  func.func @transform_2(%arg0: i32, %arg1: i32, %arg2: memref<2xi32, #tpu.memory_space<smem>>, %arg3: memref<2xi32, #tpu.memory_space<smem>>) -> (i32, i32, i32) {
    %c0_i32 = arith.constant 0 : i32
    %c0_i32_0 = arith.constant 0 : i32
    %c0_i32_1 = arith.constant 0 : i32
    %c0_i32_2 = arith.constant 0 : i32
    return %c0_i32, %c0_i32_0, %c0_i32_1 : i32, i32, i32
  }
  func.func @transform_3(%arg0: i32, %arg1: i32, %arg2: memref<2xi32, #tpu.memory_space<smem>>, %arg3: memref<2xi32, #tpu.memory_space<smem>>) -> (i32, i32, i32) {
    %c0_i32 = arith.constant 0 : i32
    %c0_i32_0 = arith.constant 0 : i32
    return %arg0, %c0_i32, %arg1 : i32, i32, i32
  }
}

</mosaic_0001>

<llo_original>
// kernel: _speed_perturb_and_mask.1
$region0: #{_speed_perturb_and_mask.1}
  #allocation0 [shape = 'u32[]', space=smem, size = 0x4, offset = 0x4, fixed_abs, tag = 'smem constant byte address 0x4 - core index']
  #allocation1 [shape = 'u32[144,128]{1,0:T(1,128)}', space=vmem, size = 0x12000, scoped, tag = 'internal scratch']
  #allocation2 [shape = 's32[1]{0}', space=sflag, size = 0x4, scoped, tag = 'scoped memory for _speed_perturb_and_mask.1']
  #allocation3 [shape = 'u8[512]{0}', space=smem, size = 0x200, scoped, tag = 'prefetched SMEM operand 0']
  #allocation4 [shape = 'u8[512]{0}', space=smem, size = 0x200, scoped, tag = 'prefetched SMEM operand 1']
  %s0 = inlined_call_operand.vmem [shape: s32[2], index: 0, kind: input, shape index: {}]
  %s1 = inlined_call_operand.vmem [shape: s32[2], index: 1, kind: input, shape index: {}]
  %s2 = inlined_call_operand.vmem [shape: f32[2,7,512], index: 2, kind: input, shape index: {}, may-alias: {2,3}]
  %s3 = inlined_call_operand.vmem [shape: f32[2,7,512], index: 3, kind: input, shape index: {}, may-alias: {2,3}]
  %s4 = inlined_call_operand.vmem [shape: f32[3,10,7], index: 4, kind: input, shape index: {}]
  %s5 = inlined_call_operand.vmem [shape: f32[2,10,384], index: 5, kind: output, shape index: {}]
  %s6 = sld [smem:[#allocation0]]
  $region79: #{_speed_perturb_and_mask.1} parent=0
    _
  %s8 = ssub.s32 1, %s6
  %s9 = scalar_select 0, %s8, %s6
  %s10 = sshll.u32 %s0, 4
  %s11 = int_to_ptr.vmem [resolvable:$true] %s10
  %13 = dma.vmem_to_smem %s11, 16, [#allocation3], [#allocation2]
  %s14 = sshll.u32 %s1, 4
  %s15 = int_to_ptr.vmem [resolvable:$true] %s14
  %17 = dma.vmem_to_smem %s15, 16, [#allocation4], [#allocation2]
  %18 = dma.done [#allocation2], 32
  %19 = sfence
  $region1: #{_speed_perturb_and_mask.1} parent=0
    #allocation5 [shape = 'u8[16384]{0}', space=vmem, size = 0x4000, scoped, tag = 'output window, operand 0']
    loop: start=0, step=1, limit=8
    $region2: #{_speed_perturb_and_mask.1} parent=1 // loop_pre_header
      _
    $region3: #{_speed_perturb_and_mask.1} parent=1 // loop_header
      %s21 = sphi 0, %s25
      %p22 = scmp.ge.s32.totalorder %s21, 8
      %s28 = sphi 0, %s40
      %s29 = sphi 0, %s36
      %s30 = sphi 0, %s28
      %s31 = sphi 0, %s29
      %s32 = sphi 0, %s30
      %s33 = sphi 0, %s31
      %s45 = sphi 0, %s47
      %s48 = sphi 0, %s45
      %s49 = sphi 0, %s48
      %s65 = sphi 0, %s49
      %s75 = sphi 0, %s77
      %s78 = sphi 0, %s75
      %s79 = sphi 0, %s78
      %s95 = sphi 0, %s79
      %s99 = sphi 0, %s99
      %s101 = sphi 0, %s99
      %s102 = sphi 0, %s101
      %s116 = sphi 0, %s102
      %s124 = sphi 0, %s126
      %s127 = sphi 0, %s124
      %s128 = sphi 0, %s127
      %s144 = sphi 0, %s128
    $region4: #{_speed_perturb_and_mask.1} parent=1 // loop_header_branch
      %24 = sbr.rel (%p22) target = $region8
    $region5: #{_speed_perturb_and_mask.1} parent=1 // loop_body
      %s26 = ssub.s32 %s21, 1
      %s27 = ssub.s32 %s21, 2
      %s34 = sadd.s32 1, %s29
      %p35 = scmp.ge.s32.totalorder %s34, 3
      %s36 = scalar_select %p35, 0, %s34
      %s37 = sadd.s32 1, %s28
      %s38 = scalar_select %p35, %s37, %s28
      %p39 = scmp.ge.s32.totalorder %s38, 2
      %s40 = scalar_select %p39, 0, %s38
      %s41 = ssub.s32 %s28, %s40
      %s42 = ssub.s32 %s29, %s36
      %s43 = sor.u32 %s41, %s42
      %p44 = scmp.eq.s32.totalorder %s43, 0
      %s46 = sadd.s32 %s45, 1
      %s47 = scalar_select %p44, %s45, %s46
      %p50 = pneg %p44
      %p51 = scmp.eq.s32.totalorder %s21, 5
      %p52 = por %p50, %p51
      %p53 = scmp.ne.s32.totalorder %s45, %s48
      %p54 = scmp.eq.s32.totalorder %s21, 0
      %p55 = por %p53, %p54
      %p56 = scmp.ne.s32.totalorder %s45, %s48
      %p57 = scmp.eq.s32.totalorder %s26, 5
      %p58 = por %p56, %p57
      %p59 = scmp.ne.s32.totalorder %s48, %s49
      %p60 = scmp.eq.s32.totalorder %s26, 0
      %p61 = por %p59, %p60
      %p62 = scmp.ne.s32.totalorder %s48, %s49
      %p63 = scmp.eq.s32.totalorder %s27, 5
      %p64 = por %p62, %p63
      %p66 = scmp.ne.s32.totalorder %s49, %s65
      %p67 = scmp.eq.s32.totalorder %s27, 0
      %p68 = por %p66, %p67
      %s69 = sadd.s32 %s29, 1
      %s70 = sadd.s32 %s36, 1
      %s71 = ssub.s32 %s28, %s40
      %s72 = ssub.s32 %s69, %s70
      %s73 = sor.u32 %s71, %s72
      %p74 = scmp.eq.s32.totalorder %s73, 0
      %s76 = sadd.s32 %s75, 1
      %s77 = scalar_select %p74, %s75, %s76
      %p80 = pneg %p74
      %p81 = scmp.eq.s32.totalorder %s21, 5
      %p82 = por %p80, %p81
      %p83 = scmp.ne.s32.totalorder %s75, %s78
      %p84 = scmp.eq.s32.totalorder %s21, 0
      %p85 = por %p83, %p84
      %p86 = scmp.ne.s32.totalorder %s75, %s78
      %p87 = scmp.eq.s32.totalorder %s26, 5
      %p88 = por %p86, %p87
      %p89 = scmp.ne.s32.totalorder %s78, %s79
      %p90 = scmp.eq.s32.totalorder %s26, 0
      %p91 = por %p89, %p90
      %p92 = scmp.ne.s32.totalorder %s78, %s79
      %p93 = scmp.eq.s32.totalorder %s27, 5
      %p94 = por %p92, %p93
      %p96 = scmp.ne.s32.totalorder %s79, %s95
      %p97 = scmp.eq.s32.totalorder %s27, 0
      %p98 = por %p96, %p97
      %s100 = sadd.s32 %s99, 1
      %p103 = scmp.eq.s32.totalorder %s21, 5
      %p104 = scmp.ne.s32.totalorder %s99, %s101
      %p105 = scmp.eq.s32.totalorder %s21, 0
      %p106 = por %p104, %p105
      %p107 = scmp.ne.s32.totalorder %s99, %s101
      %p108 = scmp.eq.s32.totalorder %s26, 5
      %p109 = por %p107, %p108
      %p110 = scmp.ne.s32.totalorder %s101, %s102
      %p111 = scmp.eq.s32.totalorder %s26, 0
      %p112 = por %p110, %p111
      %p113 = scmp.ne.s32.totalorder %s101, %s102
      %p114 = scmp.eq.s32.totalorder %s27, 5
      %p115 = por %p113, %p114
      %p117 = scmp.ne.s32.totalorder %s102, %s116
      %p118 = scmp.eq.s32.totalorder %s27, 0
      %p119 = por %p117, %p118
      %s120 = ssub.s32 %s28, %s40
      %s121 = ssub.s32 %s29, %s36
      %s122 = sor.u32 %s120, %s121
      %p123 = scmp.eq.s32.totalorder %s122, 0
      %s125 = sadd.s32 %s124, 1
      %s126 = scalar_select %p123, %s124, %s125
      %p129 = pneg %p123
      %p130 = scmp.eq.s32.totalorder %s21, 5
      %p131 = por %p129, %p130
      %p132 = scmp.ne.s32.totalorder %s124, %s127
      %p133 = scmp.eq.s32.totalorder %s21, 0
      %p134 = por %p132, %p133
      %p135 = scmp.ne.s32.totalorder %s124, %s127
      %p136 = scmp.eq.s32.totalorder %s26, 5
      %p137 = por %p135, %p136
      %p138 = scmp.ne.s32.totalorder %s127, %s128
      %p139 = scmp.eq.s32.totalorder %s26, 0
      %p140 = por %p138, %p139
      %p141 = scmp.ne.s32.totalorder %s127, %s128
      %p142 = scmp.eq.s32.totalorder %s27, 5
      %p143 = por %p141, %p142
      %p145 = scmp.ne.s32.totalorder %s128, %s144
      %p146 = scmp.eq.s32.totalorder %s27, 0
      %p147 = por %p145, %p146
      %p148 = scmp.le.s32.totalorder 1, %s21
      %p149 = scmp.lt.s32.totalorder %s21, 7
      %p150 = pnand %p148, %p149
      %p151 = pneg %p150
      // Predicated region
      $region9: #{_speed_perturb_and_mask.1} parent=5 // pred_check
        _
      $region10: #{_speed_perturb_and_mask.1} parent=5 // pred_check_branch
        %153 = sbr.rel (%p150) target = $region12
      $region11: #{_speed_perturb_and_mask.1} parent=5 // pred_region
        %s154 = ssub.s32 %s21, 1
        // Predicated region
        $region13: #{_speed_perturb_and_mask.1} parent=11 // pred_check
          %p155 = pneg %p112
        $region14: #{_speed_perturb_and_mask.1} parent=11 // pred_check_branch
          %157 = sbr.rel (%p155) target = $region16
        $region15: #{_speed_perturb_and_mask.1} parent=11 // pred_region
          _
        $region16: #{_speed_perturb_and_mask.1} parent=11 // pred_fallthru
          _
      $region12: #{_speed_perturb_and_mask.1} parent=5 // pred_fallthru
        _
      %p158 = scmp.lt.s32.totalorder %s21, 6
      // Predicated region
      $region17: #{_speed_perturb_and_mask.1} parent=5 // pred_check
        %p159 = pneg %p158
      $region18: #{_speed_perturb_and_mask.1} parent=5 // pred_check_branch
        %161 = sbr.rel (%p159) target = $region20
      $region19: #{_speed_perturb_and_mask.1} parent=5 // pred_region
        // Predicated region
        $region21: #{_speed_perturb_and_mask.1} parent=19 // pred_check
          %p162 = pneg %p55
        $region22: #{_speed_perturb_and_mask.1} parent=19 // pred_check_branch
          %164 = sbr.rel (%p162) target = $region24
        $region23: #{_speed_perturb_and_mask.1} parent=19 // pred_region
          %p165 = scmp.lt.s32.totalorder %s28, 1
          %s166 = scalar_select %p165, %s28, 1
          %p167 = scmp.lt.s32.totalorder %s29, 3
          %s168 = scalar_select %p167, %s29, 3
          %s169 = smul.addr %s166, 4
          %s170 = sadd.s32 %s168, %s169
          %s171 = smul.addr %s170, 8
          %s172 = scalar_lea.vmem %s2, %s171
        $region24: #{_speed_perturb_and_mask.1} parent=19 // pred_fallthru
          _
        // Predicated region
        $region25: #{_speed_perturb_and_mask.1} parent=19 // pred_check
          %p173 = pneg %p85
        $region26: #{_speed_perturb_and_mask.1} parent=19 // pred_check_branch
          %175 = sbr.rel (%p173) target = $region28
        $region27: #{_speed_perturb_and_mask.1} parent=19 // pred_region
          %s176 = sadd.s32 %s29, 1
          %p177 = scmp.lt.s32.totalorder %s28, 1
          %s178 = scalar_select %p177, %s28, 1
          %p179 = scmp.lt.s32.totalorder %s176, 3
          %s180 = scalar_select %p179, %s176, 3
          %s181 = smul.addr %s178, 4
          %s182 = sadd.s32 %s180, %s181
          %s183 = smul.addr %s182, 8
          %s184 = scalar_lea.vmem %s3, %s183
          %s185 = sadd.s32 %s29, 1
        $region28: #{_speed_perturb_and_mask.1} parent=19 // pred_fallthru
          _
      $region20: #{_speed_perturb_and_mask.1} parent=5 // pred_fallthru
        _
      %p186 = scmp.le.s32.totalorder 1, %s21
      %p187 = scmp.lt.s32.totalorder %s21, 7
      %p188 = pnand %p186, %p187
      %p189 = pneg %p188
      // Predicated region
      $region29: #{_speed_perturb_and_mask.1} parent=5 // pred_check
        _
      $region30: #{_speed_perturb_and_mask.1} parent=5 // pred_check_branch
        %191 = sbr.rel (%p188) target = $region32
      $region31: #{_speed_perturb_and_mask.1} parent=5 // pred_region
        %s192 = ssub.s32 %s21, 1
        %p193 = scmp.lt.s32.totalorder %s30, 1
        %s194 = scalar_select %p193, %s30, 1
        %p195 = scmp.lt.s32.totalorder %s31, 3
        %s196 = scalar_select %p195, %s31, 3
        %s197 = smul.addr %s194, 4
        %s198 = sadd.s32 %s196, %s197
        %s199 = smul.addr %s198, 8
        %s200 = scalar_lea.vmem %s2, %s199
        %p201 = pneg %p61
        %p202 = pneg %p58
        %s203 = sadd.s32 %s31, 1
        %p204 = scmp.lt.s32.totalorder %s30, 1
        %s205 = scalar_select %p204, %s30, 1
        %p206 = scmp.lt.s32.totalorder %s203, 3
        %s207 = scalar_select %p206, %s203, 3
        %s208 = smul.addr %s205, 4
        %s209 = sadd.s32 %s207, %s208
        %s210 = smul.addr %s209, 8
        %s211 = scalar_lea.vmem %s3, %s210
        %p212 = pneg %p91
        %p213 = pneg %p88
        %p214 = pneg %p112
        %p215 = pneg %p109
        %p216 = pneg %p140
        %p217 = pneg %p137
        %s218 = sand.u32 %s127, 1
        %s219 = sand.u32 %s127, 1
        %s220 = smul.addr %s219, 16
        %s221 = scalar_lea.vmem [#allocation5], %s220
        %p222 = scmp.lt.s32.totalorder %s30, 1
        %s223 = scalar_select %p222, %s30, 1
        %p224 = scmp.lt.s32.totalorder %s31, 3
        %s225 = scalar_select %p224, %s31, 3
        %s226 = smul.addr %s223, 4
        %s227 = sadd.s32 %s225, %s226
        %s228 = smul.addr %s227, 8
        %s229 = scalar_lea.vmem %s2, %s228
        %s230 = sadd.s32 %s31, 1
        %p231 = scmp.lt.s32.totalorder %s30, 1
        %s232 = scalar_select %p231, %s30, 1
        %p233 = scmp.lt.s32.totalorder %s230, 3
        %s234 = scalar_select %p233, %s230, 3
        %s235 = smul.addr %s232, 4
        %s236 = sadd.s32 %s234, %s235
        %s237 = smul.addr %s236, 8
        %s238 = scalar_lea.vmem %s3, %s237
        %s239 = sadd.s32 %s31, 1
        %v240 = vld [vmem:[%s229] sm:$0x7f]
        %v241 = vld [vmem:[%s4] sm:$0xff]
        %v242 = vld [vmem:[%s4 + $0x8] sm:$0x3]
        %v243 = vld [vmem:[%s238] sm:$0x7f]
        %s244 = scalar_lea.vmem %s4, 16
        %v245 = vld [vmem:[%s244] sm:$0xff]
        %v246 = vld [vmem:[%s244 + $0x8] sm:$0x3]
        %249 = vrot.lane.b32.xlu0 %v240, 127
        %v250 = vpop.permute.xlu0 %249
        %251 = vrot.lane.b32.xlu0 %v243, 127
        %v252 = vpop.permute.xlu0 %251
        %vm253 = vcmask 1039360
        %v254 = vsel %vm253, %v250, %v252
        %vm255 = vcmask 56320
        %v257 = vsel %vm255, %v245, 0
        %v260 = vsel %vm255, %v246, 0
        %vm262 = vcmask 1046528
        %v263 = vsel %vm262, %v254, 0
        %265 = vmatprep.subr.mxu0 0.0
        %266 = vmatpush1.msra.mxu0 %v263
        %267 = vmatprep.subr.mxu0 0.0
        %268 = vmatpush1.msra.mxu0 0.0
        %269 = vmatprep.subr.mxu0 0.0
        %270 = vmatpush1.msra.mxu0 0.0
        %271 = vmatprep.subr.mxu0 0.0
        %272 = vmatpush1.msra.mxu0 0.0
        %273 = vmatprep.subr.mxu0 0.0
        %274 = vmatpush1.msra.mxu0 0.0
        %275 = vmatprep.subr.mxu0 0.0
        %276 = vmatpush1.msra.mxu0 0.0
        %277 = vmatprep.subr.mxu0 0.0
        %278 = vmatpush1.msra.mxu0 0.0
        %279 = vmatprep.subr.mxu0 0.0
        %280 = vmatpush1.msra.mxu0 0.0
        %281 = vmatprep.subr.mxu0 0.0
        %282 = vmatpush1.msra.mxu0 0.0
        %283 = vmatprep.subr.mxu0 0.0
        %284 = vmatpush1.msra.mxu0 0.0
        %285 = vmatprep.subr.mxu0 0.0
        %286 = vmatpush1.msra.mxu0 0.0
        %287 = vmatprep.subr.mxu0 0.0
        %288 = vmatpush1.msra.mxu0 0.0
        %289 = vmatprep.subr.mxu0 0.0
        %290 = vmatpush1.msra.mxu0 0.0
        %291 = vmatprep.subr.mxu0 0.0
        %292 = vmatpush1.msra.mxu0 0.0
        %293 = vmatprep.subr.mxu0 0.0
        %294 = vmatpush1.msra.mxu0 0.0
        %295 = vmatprep.subr.mxu0 0.0
        %296 = vmatpush1.msra.mxu0 0.0
        %297 = vmatprep.subr.mxu0 0.0
        %298 = vmatpush1.msra.mxu0 0.0
        %299 = vmatprep.subr.mxu0 0.0
        %300 = vmatpush1.msra.mxu0 0.0
        %301 = vmatprep.subr.mxu0 0.0
        %302 = vmatpush1.msra.mxu0 0.0
        %303 = vmatprep.subr.mxu0 0.0
        %304 = vmatpush1.msra.mxu0 0.0
        %305 = vmatprep.subr.mxu0 0.0
        %306 = vmatpush1.msra.mxu0 0.0
        %307 = vmatprep.subr.mxu0 0.0
        %308 = vmatpush1.msra.mxu0 0.0
        %309 = vmatprep.subr.mxu0 0.0
        %310 = vmatpush1.msra.mxu0 0.0
        %311 = vmatprep.subr.mxu0 0.0
        %312 = vmatpush1.msra.mxu0 0.0
        %313 = vmatprep.subr.mxu0 0.0
        %314 = vmatpush1.msra.mxu0 0.0
        %315 = vmatprep.subr.mxu0 0.0
        %316 = vmatpush1.msra.mxu0 0.0
        %317 = vmatprep.subr.mxu0 0.0
        %318 = vmatpush1.msra.mxu0 0.0
        %319 = vmatprep.subr.mxu0 0.0
        %320 = vmatpush1.msra.mxu0 0.0
        %321 = vmatprep.subr.mxu0 0.0
        %322 = vmatpush1.msra.mxu0 0.0
        %323 = vmatprep.subr.mxu0 0.0
        %324 = vmatpush1.msra.mxu0 0.0
        %325 = vmatprep.subr.mxu0 0.0
        %326 = vmatpush1.msra.mxu0 0.0
        %327 = vmatprep.subr.mxu0 0.0
        %328 = vmatpush1.msra.mxu0 0.0
        %329 = vmatprep.mubr.f32.mxu0 0.0
        %330 = vmatmul.mubr.f32.gmra.mrb[0].mxu0 %v257
        %v331 = vpop.f32.mrb[0].mxu0
        %v332 = vadd.f32 0.0, %v331
        %v333 = vpop.f32.mrb[0].mxu0
        %334 = vmatprep.mubr.f32.mxu0 0.0
        %335 = vmatmul.mubr.f32.gmra.mrb[0].mxu0 %v260
        %v336 = vpop.f32.mrb[0].mxu0
        %v337 = vadd.f32 0.0, %v336
        %v338 = vpop.f32.mrb[0].mxu0
        %339 = vdwg.mxu0
        %v341 = vsel %vm255, %v241, 0
        %v344 = vsel %vm255, %v242, 0
        %v346 = vsel %vm262, %v240, 0
        %348 = vmatprep.subr.mxu0 0.0
        %349 = vmatpush1.msra.mxu0 %v346
        %350 = vmatprep.subr.mxu0 0.0
        %351 = vmatpush1.msra.mxu0 0.0
        %352 = vmatprep.subr.mxu0 0.0
        %353 = vmatpush1.msra.mxu0 0.0
        %354 = vmatprep.subr.mxu0 0.0
        %355 = vmatpush1.msra.mxu0 0.0
        %356 = vmatprep.subr.mxu0 0.0
        %357 = vmatpush1.msra.mxu0 0.0
        %358 = vmatprep.subr.mxu0 0.0
        %359 = vmatpush1.msra.mxu0 0.0
        %360 = vmatprep.subr.mxu0 0.0
        %361 = vmatpush1.msra.mxu0 0.0
        %362 = vmatprep.subr.mxu0 0.0
        %363 = vmatpush1.msra.mxu0 0.0
        %364 = vmatprep.subr.mxu0 0.0
        %365 = vmatpush1.msra.mxu0 0.0
        %366 = vmatprep.subr.mxu0 0.0
        %367 = vmatpush1.msra.mxu0 0.0
        %368 = vmatprep.subr.mxu0 0.0
        %369 = vmatpush1.msra.mxu0 0.0
        %370 = vmatprep.subr.mxu0 0.0
        %371 = vmatpush1.msra.mxu0 0.0
        %372 = vmatprep.subr.mxu0 0.0
        %373 = vmatpush1.msra.mxu0 0.0
        %374 = vmatprep.subr.mxu0 0.0
        %375 = vmatpush1.msra.mxu0 0.0
        %376 = vmatprep.subr.mxu0 0.0
        %377 = vmatpush1.msra.mxu0 0.0
        %378 = vmatprep.subr.mxu0 0.0
        %379 = vmatpush1.msra.mxu0 0.0
        %380 = vmatprep.subr.mxu0 0.0
        %381 = vmatpush1.msra.mxu0 0.0
        %382 = vmatprep.subr.mxu0 0.0
        %383 = vmatpush1.msra.mxu0 0.0
        %384 = vmatprep.subr.mxu0 0.0
        %385 = vmatpush1.msra.mxu0 0.0
        %386 = vmatprep.subr.mxu0 0.0
        %387 = vmatpush1.msra.mxu0 0.0
        %388 = vmatprep.subr.mxu0 0.0
        %389 = vmatpush1.msra.mxu0 0.0
        %390 = vmatprep.subr.mxu0 0.0
        %391 = vmatpush1.msra.mxu0 0.0
        %392 = vmatprep.subr.mxu0 0.0
        %393 = vmatpush1.msra.mxu0 0.0
        %394 = vmatprep.subr.mxu0 0.0
        %395 = vmatpush1.msra.mxu0 0.0
        %396 = vmatprep.subr.mxu0 0.0
        %397 = vmatpush1.msra.mxu0 0.0
        %398 = vmatprep.subr.mxu0 0.0
        %399 = vmatpush1.msra.mxu0 0.0
        %400 = vmatprep.subr.mxu0 0.0
        %401 = vmatpush1.msra.mxu0 0.0
        %402 = vmatprep.subr.mxu0 0.0
        %403 = vmatpush1.msra.mxu0 0.0
        %404 = vmatprep.subr.mxu0 0.0
        %405 = vmatpush1.msra.mxu0 0.0
        %406 = vmatprep.subr.mxu0 0.0
        %407 = vmatpush1.msra.mxu0 0.0
        %408 = vmatprep.subr.mxu0 0.0
        %409 = vmatpush1.msra.mxu0 0.0
        %410 = vmatprep.subr.mxu0 0.0
        %411 = vmatpush1.msra.mxu0 0.0
        %412 = vmatprep.mubr.f32.mxu0 0.0
        %413 = vmatmul.mubr.f32.gmra.mrb[0].mxu0 %v341
        %v414 = vpop.f32.mrb[0].mxu0
        %v415 = vadd.f32 %v332, %v414
        %v416 = vpop.f32.mrb[0].mxu0
        %417 = vmatprep.mubr.f32.mxu0 0.0
        %418 = vmatmul.mubr.f32.gmra.mrb[0].mxu0 %v344
        %v419 = vpop.f32.mrb[0].mxu0
        %v420 = vadd.f32 %v337, %v419
        %v421 = vpop.f32.mrb[0].mxu0
        %422 = vdwg.mxu0
        %s423 = scalar_lea.vmem %s4, 32
        %v424 = vld [vmem:[%s423] sm:$0xff]
        %v425 = vld [vmem:[%s423 + $0x8] sm:$0x3]
        %426 = vrot.lane.b32.xlu0 %v240, 126
        %v427 = vpop.permute.xlu0 %426
        %428 = vrot.lane.b32.xlu0 %v243, 126
        %v429 = vpop.permute.xlu0 %428
        %vm430 = vcmask 1031168
        %v431 = vsel %vm430, %v427, %v429
        %v433 = vsel %vm255, %v424, 0
        %v436 = vsel %vm255, %v425, 0
        %v438 = vsel %vm262, %v431, 0
        %440 = vmatprep.subr.mxu0 0.0
        %441 = vmatpush1.msra.mxu0 %v438
        %442 = vmatprep.subr.mxu0 0.0
        %443 = vmatpush1.msra.mxu0 0.0
        %444 = vmatprep.subr.mxu0 0.0
        %445 = vmatpush1.msra.mxu0 0.0
        %446 = vmatprep.subr.mxu0 0.0
        %447 = vmatpush1.msra.mxu0 0.0
        %448 = vmatprep.subr.mxu0 0.0
        %449 = vmatpush1.msra.mxu0 0.0
        %450 = vmatprep.subr.mxu0 0.0
        %451 = vmatpush1.msra.mxu0 0.0
        %452 = vmatprep.subr.mxu0 0.0
        %453 = vmatpush1.msra.mxu0 0.0
        %454 = vmatprep.subr.mxu0 0.0
        %455 = vmatpush1.msra.mxu0 0.0
        %456 = vmatprep.subr.mxu0 0.0
        %457 = vmatpush1.msra.mxu0 0.0
        %458 = vmatprep.subr.mxu0 0.0
        %459 = vmatpush1.msra.mxu0 0.0
        %460 = vmatprep.subr.mxu0 0.0
        %461 = vmatpush1.msra.mxu0 0.0
        %462 = vmatprep.subr.mxu0 0.0
        %463 = vmatpush1.msra.mxu0 0.0
        %464 = vmatprep.subr.mxu0 0.0
        %465 = vmatpush1.msra.mxu0 0.0
        %466 = vmatprep.subr.mxu0 0.0
        %467 = vmatpush1.msra.mxu0 0.0
        %468 = vmatprep.subr.mxu0 0.0
        %469 = vmatpush1.msra.mxu0 0.0
        %470 = vmatprep.subr.mxu0 0.0
        %471 = vmatpush1.msra.mxu0 0.0
        %472 = vmatprep.subr.mxu0 0.0
        %473 = vmatpush1.msra.mxu0 0.0
        %474 = vmatprep.subr.mxu0 0.0
        %475 = vmatpush1.msra.mxu0 0.0
        %476 = vmatprep.subr.mxu0 0.0
        %477 = vmatpush1.msra.mxu0 0.0
        %478 = vmatprep.subr.mxu0 0.0
        %479 = vmatpush1.msra.mxu0 0.0
        %480 = vmatprep.subr.mxu0 0.0
        %481 = vmatpush1.msra.mxu0 0.0
        %482 = vmatprep.subr.mxu0 0.0
        %483 = vmatpush1.msra.mxu0 0.0
        %484 = vmatprep.subr.mxu0 0.0
        %485 = vmatpush1.msra.mxu0 0.0
        %486 = vmatprep.subr.mxu0 0.0
        %487 = vmatpush1.msra.mxu0 0.0
        %488 = vmatprep.subr.mxu0 0.0
        %489 = vmatpush1.msra.mxu0 0.0
        %490 = vmatprep.subr.mxu0 0.0
        %491 = vmatpush1.msra.mxu0 0.0
        %492 = vmatprep.subr.mxu0 0.0
        %493 = vmatpush1.msra.mxu0 0.0
        %494 = vmatprep.subr.mxu0 0.0
        %495 = vmatpush1.msra.mxu0 0.0
        %496 = vmatprep.subr.mxu0 0.0
        %497 = vmatpush1.msra.mxu0 0.0
        %498 = vmatprep.subr.mxu0 0.0
        %499 = vmatpush1.msra.mxu0 0.0
        %500 = vmatprep.subr.mxu0 0.0
        %501 = vmatpush1.msra.mxu0 0.0
        %502 = vmatprep.subr.mxu0 0.0
        %503 = vmatpush1.msra.mxu0 0.0
        %504 = vmatprep.mubr.f32.mxu0 0.0
        %505 = vmatmul.mubr.f32.gmra.mrb[0].mxu0 %v433
        %v506 = vpop.f32.mrb[0].mxu0
        %v507 = vadd.f32 0.0, %v506
        %v508 = vpop.f32.mrb[0].mxu0
        %509 = vmatprep.mubr.f32.mxu0 0.0
        %510 = vmatmul.mubr.f32.gmra.mrb[0].mxu0 %v436
        %v511 = vpop.f32.mrb[0].mxu0
        %v512 = vadd.f32 0.0, %v511
        %v513 = vpop.f32.mrb[0].mxu0
        %514 = vdwg.mxu0
        %v515 = vadd.f32 %v415, %v507
        %v516 = vadd.f32 %v420, %v512
        %s517 = smul.u32 %s31, 128
        %v518 = vlaneseq
        %v519 = vand.u32 %v518, 127
        %v520 = vstv %s517
        %v521 = vadd.s32 %v520, %v519
        %v522 = vlaneseq
        %v523 = vshrl.u32 %v522, 7
        %v524 = vadd.s32 %v523, 8
        %v525 = vmul.u32 %v521, 10
        %v526 = vadd.s32 %v525, %v523
        %v527 = vadd.s32 %v525, %v524
        %s528 = sld [smem:[#allocation3 + %s30]]
        %v529 = vstv %s528
        %vm530 = vcmp.lt.s32.totalorder %v526, %v529
        %vm531 = vcmp.lt.s32.totalorder %v527, %v529
        %s532 = sld [smem:[#allocation4 + %s30]]
        %v533 = vstv %s532
        %vm534 = vcmp.ge.s32.totalorder %v526, %v533
        %vm535 = vcmp.ge.s32.totalorder %v527, %v533
        %vm536 = vmor %vm530, %vm534
        %vm537 = vmor %vm531, %vm535
        %v538 = vsel %vm536, %v515, 0.0
        %v539 = vsel %vm537, %v516, 0.0
        %540 = vst [vmem:[%s221] sm:$0xff] %v538
        %541 = vst [vmem:[%s221 + $0x8] sm:$0x3] %v539
        %s542 = sand.u32 %s127, 1
        %s543 = sand.u32 %s127, 1
        %s544 = smul.addr %s543, 16
        %s545 = scalar_lea.vmem [#allocation5], %s544
        // Predicated region
        $region33: #{_speed_perturb_and_mask.1} parent=31 // pred_check
          %p546 = pneg %p137
        $region34: #{_speed_perturb_and_mask.1} parent=31 // pred_check_branch
          %548 = sbr.rel (%p546) target = $region36
        $region35: #{_speed_perturb_and_mask.1} parent=31 // pred_region
          %s549 = smul.addr %s30, 6
          %s550 = sadd.s32 %s31, %s549
          %s551 = smul.addr %s550, 8
          %s552 = scalar_lea.vmem %s5, %s551
          // Predicated region
          $region37: #{_speed_perturb_and_mask.1} parent=35 // pred_check
            _
          $region38: #{_speed_perturb_and_mask.1} parent=35 // pred_check_branch
            %554 = sbr.rel (0) target = $region40
          $region39: #{_speed_perturb_and_mask.1} parent=35 // pred_region
            // Predicated region
            $region41: #{_speed_perturb_and_mask.1} parent=39 // pred_check
              _
            $region42: #{_speed_perturb_and_mask.1} parent=39 // pred_check_branch
              %556 = sbr.rel (0) target = $region44
            $region43: #{_speed_perturb_and_mask.1} parent=39 // pred_region
              // Predicated region
              $region56: #{_speed_perturb_and_mask.1} parent=43 // pred_check
                _
              $region57: #{_speed_perturb_and_mask.1} parent=43 // pred_check_branch
                %573 = sbr.rel (0) target = $region59
              $region58: #{_speed_perturb_and_mask.1} parent=43 // pred_region
                loop: start=0, step=1, limit=1
                $region60: #{_speed_perturb_and_mask.1} parent=58 // loop_pre_header
                  _
                $region61: #{_speed_perturb_and_mask.1} parent=58 // loop_header
                  %s575 = sphi 0, %s579
                  %p576 = scmp.ge.s32.totalorder %s575, 1
                  %s580 = sphi %s545, %s545
                  %s581 = sphi %s552, %s552
                $region62: #{_speed_perturb_and_mask.1} parent=58 // loop_header_branch
                  %578 = sbr.rel (%p576) target = $region66
                $region63: #{_speed_perturb_and_mask.1} parent=58 // loop_body
                  %v582 = vld [vmem:[%s580] sm:$0xff]
                  %583 = vst [vmem:[%s581] sm:$0xff] %v582
                  %v584 = vld [vmem:[%s580 + $0x8] sm:$0xff]
                  %585 = vst [vmem:[%s581 + $0x18] sm:$0xff] %v584
                $region64: #{_speed_perturb_and_mask.1} parent=58 // loop_footer
                  %s579 = sadd.s32 1, %s575
                $region65: #{_speed_perturb_and_mask.1} parent=58 // loop_footer_branch
                  %574 = sbr.rel target = $region61
                $region66: #{_speed_perturb_and_mask.1} parent=58 // loop_exit
                  _
              $region59: #{_speed_perturb_and_mask.1} parent=43 // pred_fallthru
                _
              // Predicated region
              $region67: #{_speed_perturb_and_mask.1} parent=43 // pred_check
                _
              $region68: #{_speed_perturb_and_mask.1} parent=43 // pred_check_branch
                %587 = sbr.rel target = $region70
              $region69: #{_speed_perturb_and_mask.1} parent=43 // pred_region
                _
              $region70: #{_speed_perturb_and_mask.1} parent=43 // pred_fallthru
                _
            $region44: #{_speed_perturb_and_mask.1} parent=39 // pred_fallthru
              _
            // Predicated region
            $region45: #{_speed_perturb_and_mask.1} parent=39 // pred_check
              _
            $region46: #{_speed_perturb_and_mask.1} parent=39 // pred_check_branch
              %558 = sbr.rel target = $region48
            $region47: #{_speed_perturb_and_mask.1} parent=39 // pred_region
              loop: start=0, step=1, limit=1
              $region49: #{_speed_perturb_and_mask.1} parent=47 // loop_pre_header
                _
              $region50: #{_speed_perturb_and_mask.1} parent=47 // loop_header
                %s561 = sphi 0, %s565
                %p562 = scmp.ge.s32.totalorder %s561, 1
                %s566 = sphi %s545, %s545
                %s567 = sphi %s552, %s552
              $region51: #{_speed_perturb_and_mask.1} parent=47 // loop_header_branch
                %564 = sbr.rel (%p562) target = $region55
              $region52: #{_speed_perturb_and_mask.1} parent=47 // loop_body
                %v568 = vld [vmem:[%s566] sm:$0xff]
                %569 = vst [vmem:[%s567] sm:$0xff] %v568
                %v570 = vld [vmem:[%s566 + $0x8] sm:$0xff]
                %571 = vst [vmem:[%s567 + $0x18] sm:$0xff] %v570
              $region53: #{_speed_perturb_and_mask.1} parent=47 // loop_footer
                %s565 = sadd.s32 1, %s561
              $region54: #{_speed_perturb_and_mask.1} parent=47 // loop_footer_branch
                %560 = sbr.rel target = $region50
              $region55: #{_speed_perturb_and_mask.1} parent=47 // loop_exit
                _
            $region48: #{_speed_perturb_and_mask.1} parent=39 // pred_fallthru
              _
          $region40: #{_speed_perturb_and_mask.1} parent=35 // pred_fallthru
            _
          %588 = vnop
        $region36: #{_speed_perturb_and_mask.1} parent=31 // pred_fallthru
          _
      $region32: #{_speed_perturb_and_mask.1} parent=5 // pred_fallthru
        _
      %p589 = scmp.le.s32.totalorder 2, %s21
      // Predicated region
      $region71: #{_speed_perturb_and_mask.1} parent=5 // pred_check
        %p590 = pneg %p589
      $region72: #{_speed_perturb_and_mask.1} parent=5 // pred_check_branch
        %592 = sbr.rel (%p590) target = $region74
      $region73: #{_speed_perturb_and_mask.1} parent=5 // pred_region
        %s593 = ssub.s32 %s21, 2
        // Predicated region
        $region75: #{_speed_perturb_and_mask.1} parent=73 // pred_check
          %p594 = pneg %p143
        $region76: #{_speed_perturb_and_mask.1} parent=73 // pred_check_branch
          %596 = sbr.rel (%p594) target = $region78
        $region77: #{_speed_perturb_and_mask.1} parent=73 // pred_region
          %s597 = sand.u32 %s128, 1
          %s598 = sand.u32 %s128, 1
          %s599 = smul.addr %s598, 16
          %s600 = scalar_lea.vmem [#allocation5], %s599
        $region78: #{_speed_perturb_and_mask.1} parent=73 // pred_fallthru
          _
      $region74: #{_speed_perturb_and_mask.1} parent=5 // pred_fallthru
        _
    $region6: #{_speed_perturb_and_mask.1} parent=1 // loop_footer
      %s25 = sadd.s32 1, %s21
    $region7: #{_speed_perturb_and_mask.1} parent=1 // loop_footer_branch
      %20 = sbr.rel target = $region3
    $region8: #{_speed_perturb_and_mask.1} parent=1 // loop_exit
      _

</llo_original>
